<compile_context>
chip_gen: v6e
topology: v6e:2x2x1
jax: 0.10.0
libtpu: 0.0.40
codegen_flags: <defaults>
</compile_context>

<pallas_src>
import functools

import numpy as np
import jax
import jax.numpy as jnp
from jax import lax
from jax.experimental import pallas as pl
from jax.experimental.pallas import tpu as pltpu


_MiB = 1024 * 1024
_LOGITS_TILE_BYTES = 2 * _MiB        # soft cap on the (tb, C) logits tile
_MIN_VMEM_LIMIT = 32 * _MiB


# --------------------------------------------------------------------------------------
# Generation-aware sizing helpers
# --------------------------------------------------------------------------------------
def _tpu_mem_profile():
    """Returns (feature_tile_target_bytes, vmem_limit_cap_bytes) for this generation."""
    vmem_phys = 64 * _MiB                           # conservative default (v7x-class)
    try:
        info = pltpu.get_tpu_info()
        vmem_phys = int(getattr(info, "vmem_capacity_bytes", vmem_phys) or vmem_phys)
    except Exception:
        pass
    if vmem_phys >= 100 * _MiB:                     # v5e / v6e: 128 MiB physical VMEM
        return 8 * _MiB, 100 * _MiB
    return 4 * _MiB, 48 * _MiB                      # v7x: 64 MiB per-core VMEM


def _vmem_limit(need_bytes, cap_bytes):
    return int(min(max(need_bytes + need_bytes // 4 + 4 * _MiB, _MIN_VMEM_LIMIT), cap_bytes))


def _pick_batch_tile(B, tb_cap):
    """Largest multiple-of-8 divisor of B that is <= tb_cap, preferring >= 2 batch tiles
    (keeps both v7x TensorCores busy); falls back to the full batch."""
    divs = [d for d in range(8, B + 1, 8) if B % d == 0]
    if not divs:
        return B
    pref = [d for d in divs if d < B] or divs
    under = [d for d in pref if d <= tb_cap]
    if under:
        return max(under)
    return min(divs)


# --------------------------------------------------------------------------------------
# Kernel bodies
# --------------------------------------------------------------------------------------
def _ce_rowsum(logits_ref, targets_ref):
    """Sum over the tile's rows of per-row cross entropy: logsumexp(logits) - logit[target]."""
    logits = logits_ref[...].astype(jnp.float32)               # upcast in-register
    tb, c = logits.shape
    m = jnp.max(logits, axis=1, keepdims=True)                  # (tb, 1)
    lse = m + jnp.log(jnp.sum(jnp.exp(logits - m), axis=1, keepdims=True))
    tgt = targets_ref[...]                                      # (tb, 1) int32
    # TODO(synk): for vocab-sized C, tile the class axis with an online logsumexp; for
    # classifier-sized heads the single (tb, C) tile is fine (tb is shrunk for large C).
    col = lax.broadcasted_iota(jnp.int32, (tb, c), 1)
    tgt_logit = jnp.sum(jnp.where(col == tgt, logits, 0.0), axis=1, keepdims=True)
    return jnp.sum(lse - tgt_logit)                             # scalar f32


def _ce_lanes(ce_sum, shape):
    """Pack a scalar into lane 0 of a lane-dense 128-wide slab (one unmasked vst)."""
    lane = lax.broadcasted_iota(jnp.int32, shape, len(shape) - 1)
    return jnp.where(lane == 0, ce_sum, 0.0).astype(jnp.float32)


def _unified_partial_kernel(logits_ref, targets_ref, pf_ref, sf_ref,
                            ce_ref, pfsum_ref, sfsum_ref,
                            pf_acc, sf_acc,
                            *, hw, thw, nhw_per_split, needs_mask):
    """Grid (nsplit, batch_tiles, hw_tiles_per_split).

    Streams lane-dense feature tiles, accumulating spatial sums in f32 VMEM scratch.
    At the last HW step of each (split, batch tile) the spatial sums and the CE partial
    sum are written out; cosine alignment is finished in the JAX epilogue (it needs the
    cross-split total and is only (B, Cf)-sized work)."""
    s = pl.program_id(0)
    h = pl.program_id(2)

    @pl.when(h == 0)
    def _init():
        pf_acc[...] = jnp.zeros_like(pf_acc)
        sf_acc[...] = jnp.zeros_like(sf_acc)

    # Features stay in their HBM dtype (bf16/f16/f32) on the wire; upcast in-register.
    pf = pf_ref[...].astype(jnp.float32)
    sf = sf_ref[...].astype(jnp.float32)
    if needs_mask:
        # Ragged last tile / clamped duplicate tile: mask by global element offset.
        off = (s * nhw_per_split + h) * thw
        lane = lax.broadcasted_iota(jnp.int32, pf.shape, 2)
        valid = (lane + off) < hw
        pf = jnp.where(valid, pf, 0.0)
        sf = jnp.where(valid, sf, 0.0)
    pf_acc[...] += jnp.sum(pf, axis=2)
    sf_acc[...] += jnp.sum(sf, axis=2)

    @pl.when(h == nhw_per_split - 1)
    def _finalize():
        pfsum_ref[...] = pf_acc[...].reshape(pfsum_ref.shape)
        sfsum_ref[...] = sf_acc[...].reshape(sfsum_ref.shape)
        ce_ref[...] = _ce_lanes(_ce_rowsum(logits_ref, targets_ref), ce_ref.shape)


def _ce_only_kernel(logits_ref, targets_ref, out_ref):
    """CE-only variant for the no-feature / beta == 0 path (no dummy-feature DMA)."""
    out_ref[...] = _ce_lanes(_ce_rowsum(logits_ref, targets_ref), out_ref.shape)


# --------------------------------------------------------------------------------------
# Wrappers
# --------------------------------------------------------------------------------------
def _unified_loss_pallas(global_logits, targets, local_loss, personal_features,
                         server_features, alpha, beta, *, feat_tile_bytes=None):
    B, C = global_logits.shape
    Bf, Cf = personal_features.shape[0], personal_features.shape[1]
    hw = int(np.prod(personal_features.shape[2:])) if personal_features.ndim > 2 else 1

    # NCHW -> (B, Cf, H*W) is a free reshape; do NOT upcast here (keep bf16/f16 on the wire).
    pf = personal_features.reshape(Bf, Cf, hw)
    sf = server_features.reshape(Bf, Cf, hw)
    tgt = targets.astype(jnp.int32).reshape(B, 1)

    feat_itemsize = pf.dtype.itemsize
    logit_itemsize = global_logits.dtype.itemsize

    feat_target, vmem_cap = _tpu_mem_profile()
    if feat_tile_bytes is not None:                  # test / tuning override
        feat_target = int(feat_tile_bytes)

    # ---- batch tile: prefer >=2 tiles, keep logits tile small, keep HW runs >= 512 ----
    cap_from_logits = max(8, _LOGITS_TILE_BYTES // max(1, C * logit_itemsize))
    cap_from_feat = max(8, feat_target // max(1, Cf * 512 * feat_itemsize))
    tb = _pick_batch_tile(B, min(cap_from_logits, cap_from_feat))
    nb = B // tb

    # ---- HW tile: lane-dense (multiple of 128), sized to the generation's VMEM budget ----
    lane_budget = feat_target // max(1, tb * Cf * feat_itemsize)
    thw = max(128, (lane_budget // 128) * 128)
    if thw >= hw:
        thw, nhw_total = hw, 1                       # full HW extent: no 128 constraint
    else:
        nhw_total = -(-hw // thw)                    # ragged last tile masked in-kernel

    # ---- split the HW reduction into 2 "parallel" halves when there is only one batch
    #      tile (keeps both v7x TensorCores busy); essentially free on single-TC parts. ----
    nsplit = 2 if (nb == 1 and nhw_total >= 2) else 1
    nhw_s = -(-nhw_total // nsplit)
    needs_mask = (nsplit * nhw_s * thw != hw)

    def feat_map(s, b, h):
        g = s * nhw_s + h
        if nsplit * nhw_s > nhw_total:               # clamp the (fully masked) duplicate tile
            g = jnp.minimum(g, nhw_total - 1)
        return (b, 0, g)

    feat_tile = tb * Cf * thw * feat_itemsize
    need = (4 * feat_tile                                  # pf + sf, double-buffered
            + 2 * tb * C * logit_itemsize + 2 * tb * 4     # logits + targets
            + 2 * (128 * 4 + 2 * tb * Cf * 4)              # outputs (ce slab + sums)
            + 2 * tb * Cf * 4)                             # f32 scratch accumulators

    kernel = functools.partial(_unified_partial_kernel, hw=hw, thw=thw,
                               nhw_per_split=nhw_s, needs_mask=needs_mask)

    cost = pl.CostEstimate(
        flops=int(6 * B * Cf * hw + 8 * nsplit * B * C),
        transcendentals=int(nsplit * B * (C + 1)),
        bytes_accessed=int(2 * B * Cf * hw * feat_itemsize
                           + nsplit * B * C * logit_itemsize + nsplit * B * 4
                           + nsplit * nb * (128 + 2 * tb * Cf) * 4))

    ce_parts, pf_sums, sf_sums = pl.pallas_call(
        kernel,
        out_shape=(jax.ShapeDtypeStruct((nsplit, nb, 1, 128), jnp.float32),
                   jax.ShapeDtypeStruct((nsplit, nb, tb, Cf), jnp.float32),
                   jax.ShapeDtypeStruct((nsplit, nb, tb, Cf), jnp.float32)),
        grid=(nsplit, nb, nhw_s),
        in_specs=[
            pl.BlockSpec((tb, C), lambda s, b, h: (b, 0)),          # logits (resident per b)
            pl.BlockSpec((tb, 1), lambda s, b, h: (b, 0)),          # targets
            pl.BlockSpec((tb, Cf, thw), feat_map),                  # personal features
            pl.BlockSpec((tb, Cf, thw), feat_map),                  # server features
        ],
        out_specs=(
            pl.BlockSpec((1, 1, 1, 128), lambda s, b, h: (s, b, 0, 0)),
            pl.BlockSpec((1, 1, tb, Cf), lambda s, b, h: (s, b, 0, 0)),
            pl.BlockSpec((1, 1, tb, Cf), lambda s, b, h: (s, b, 0, 0)),
        ),
        scratch_shapes=[pltpu.VMEM((tb, Cf), jnp.float32),
                        pltpu.VMEM((tb, Cf), jnp.float32)],
        compiler_params=pltpu.CompilerParams(
            dimension_semantics=("parallel", "parallel", "arbitrary"),
            vmem_limit_bytes=_vmem_limit(need, vmem_cap)),
        cost_estimate=cost,
    )(global_logits, tgt, pf, sf)

    # Tiny JAX epilogue: combine per-split spatial sums, cosine over (B, Cf), weighted sum.
    inv_hw = jnp.float32(1.0 / float(hw))
    pf_mean = pf_sums.sum(axis=0).reshape(B, Cf) * inv_hw          # == adaptive_avg_pool2d
    sf_mean = sf_sums.sum(axis=0).reshape(B, Cf) * inv_hw
    eps = jnp.float32(1e-12)                                       # F.normalize eps
    pn = pf_mean / jnp.maximum(jnp.linalg.norm(pf_mean, axis=1, keepdims=True), eps)
    sn = sf_mean / jnp.maximum(jnp.linalg.norm(sf_mean, axis=1, keepdims=True), eps)
    feature_loss = 1.0 - jnp.mean(jnp.sum(pn * sn, axis=1))

    global_loss = jnp.sum(ce_parts[0, :, 0, 0]) / B
    total = (1.0 - alpha) * global_loss + alpha * local_loss + beta * feature_loss
    return total, global_loss, feature_loss


def _ce_only_pallas(global_logits, targets):
    B, C = global_logits.shape
    tgt = targets.astype(jnp.int32).reshape(B, 1)
    itemsize = global_logits.dtype.itemsize
    _, vmem_cap = _tpu_mem_profile()

    tb = _pick_batch_tile(B, max(8, _LOGITS_TILE_BYTES // max(1, C * itemsize)))
    nb = B // tb
    need = 2 * tb * C * itemsize + 2 * tb * 4 + 2 * 128 * 4
    cost = pl.CostEstimate(flops=int(8 * B * C), transcendentals=int(B * (C + 1)),
                           bytes_accessed=int(B * C * itemsize + B * 4 + nb * 128 * 4))

    partials = pl.pallas_call(
        _ce_only_kernel,
        out_shape=jax.ShapeDtypeStruct((nb, 1, 128), jnp.float32),
        grid=(nb,),
        in_specs=[pl.BlockSpec((tb, C), lambda b: (b, 0)),
                  pl.BlockSpec((tb, 1), lambda b: (b, 0))],
        out_specs=pl.BlockSpec((1, 1, 128), lambda b: (b, 0, 0)),
        compiler_params=pltpu.CompilerParams(
            dimension_semantics=("parallel",),
            vmem_limit_bytes=_vmem_limit(need, vmem_cap)),
        cost_estimate=cost,
    )(global_logits, tgt)
    return jnp.sum(partials[:, 0, 0]) / B


# --------------------------------------------------------------------------------------
# Module
# --------------------------------------------------------------------------------------
class EnhancedUnifiedLoss:
    """JAX/Pallas re-implementation of the PyTorch EnhancedUnifiedLoss."""

    def __init__(self, init_alpha=0.5, init_beta=0.1):
        self.alpha = init_alpha
        self.beta = init_beta
        self.history = {'local_accuracy': [], 'global_accuracy': [], 'global_imbalance': []}

    def update_history(self, eval_results):
        if not eval_results:
            return
        local_accs, global_accs, imbalances = [], [], []
        for result in eval_results.values():
            if 'local_accuracy' in result:
                local_accs.append(result['local_accuracy'])
            if 'global_accuracy' in result:
                global_accs.append(result['global_accuracy'])
            if 'global_imbalance' in result:
                imbalances.append(result['global_imbalance'])
        if local_accs:
            self.history['local_accuracy'].append(sum(local_accs) / len(local_accs))
        if global_accs:
            self.history['global_accuracy'].append(sum(global_accs) / len(global_accs))
        if imbalances:
            valid = [i for i in imbalances if i != float('inf')]
            if valid:
                self.history['global_imbalance'].append(sum(valid) / len(valid))

    def get_adaptive_weights(self, round_idx, total_rounds):
        # Host-side scalar / history control logic (no kernel needed).
        progress = round_idx / max(1, total_rounds)
        if len(self.history['local_accuracy']) >= 3 and len(self.history['global_accuracy']) >= 3:
            window_size = min(5, len(self.history['local_accuracy']))
            recent_local_acc = self.history['local_accuracy'][-window_size:]
            recent_global_acc = self.history['global_accuracy'][-window_size:]
            local_trend = recent_local_acc[-1] - recent_local_acc[-3]
            global_trend = recent_global_acc[-1] - recent_global_acc[-3]
            current_local_acc = recent_local_acc[-1]
            current_global_acc = recent_global_acc[-1]
            if len(self.history['global_imbalance']) >= 3:
                recent_imbalance = self.history['global_imbalance'][-3:]
                imbalance_trend = recent_imbalance[-1] - recent_imbalance[0]
            else:
                imbalance_trend = 0
            acc_gap = current_local_acc - current_global_acc
            if global_trend < -1.0 and local_trend > 0:
                alpha = min(0.7, self.alpha + 0.05)
            elif global_trend > 0.5 or (global_trend > 0 and local_trend < 0):
                alpha = max(0.2, self.alpha - 0.05)
            else:
                alpha = 0.3 + 0.4 * progress + 0.1 * np.tanh(acc_gap / 10)
            if global_trend < 0 or imbalance_trend > 0.2:
                beta = min(0.3, self.beta + 0.05)
            elif global_trend > 2.0 and imbalance_trend < 0:
                beta = max(0.05, self.beta - 0.03)
            else:
                beta = self.beta * (1 - abs(2 * progress - 1))
            self.alpha = alpha
            self.beta = beta
        else:
            alpha = 0.3 + 0.4 * progress
            beta = self.beta * (1 - abs(2 * progress - 1))
        return alpha, beta

    def __call__(self, global_logits, targets, local_loss, personal_features=None,
                 server_features=None, round_idx=0, total_rounds=100):
        # Match PyTorch ordering: the feature-path decision uses self.beta *before*
        # get_adaptive_weights may update it.
        use_features = (personal_features is not None and server_features is not None
                        and self.beta > 0)
        alpha, beta = self.get_adaptive_weights(round_idx, total_rounds)
        if use_features:
            return _unified_loss_pallas(global_logits, targets, local_loss,
                                        personal_features, server_features, alpha, beta)
        # No feature alignment: dedicated CE-only kernel (no dummy-feature DMA / recompile).
        ce = _ce_only_pallas(global_logits, targets)
        feature_loss = jnp.float32(0.0)
        total = (1.0 - alpha) * ce + alpha * local_loss + beta * feature_loss
        return total, ce, feature_loss


# --------------------------------------------------------------------------------------
# Pure-JAX reference (for the sanity check)
# --------------------------------------------------------------------------------------
def _reference(global_logits, targets, local_loss, pf, sf, alpha, beta):
    logits = global_logits.astype(jnp.float32)
    lse = jax.scipy.special.logsumexp(logits, axis=1)
    tgt_logit = jnp.take_along_axis(logits, targets[:, None].astype(jnp.int32), axis=1)[:, 0]
    ce = jnp.mean(lse - tgt_logit)
    pfm = jnp.mean(pf.reshape(pf.shape[0], pf.shape[1], -1).astype(jnp.float32), axis=2)
    sfm = jnp.mean(sf.reshape(sf.shape[0], sf.shape[1], -1).astype(jnp.float32), axis=2)
    pn = pfm / jnp.maximum(jnp.linalg.norm(pfm, axis=1, keepdims=True), 1e-12)
    sn = sfm / jnp.maximum(jnp.linalg.norm(sfm, axis=1, keepdims=True), 1e-12)
    fl = 1.0 - jnp.mean(jnp.sum(pn * sn, axis=1))
    return (1 - alpha) * ce + alpha * local_loss + beta * fl, ce, fl


if __name__ == "__main__":
    key = jax.random.PRNGKey(0)
    k1, k2, k3, k4, k5, k6, k7, k8 = jax.random.split(key, 8)

    B, num_classes = 8, 10
    feat_shape = (B, 4, 16, 16)            # NCHW, like the PyTorch module's inputs

    global_logits = jax.random.normal(k1, (B, num_classes), dtype=jnp.float32)
    targets = jax.random.randint(k2, (B,), 0, num_classes, dtype=jnp.int32)
    personal_features = jax.random.normal(k3, feat_shape, dtype=jnp.float32)
    server_features = jax.random.normal(k4, feat_shape, dtype=jnp.float32)
    local_loss = jnp.float32(0.7)

    round_idx, total_rounds = 10, 100
    progress = round_idx / total_rounds
    alpha = 0.3 + 0.4 * progress
    beta = 0.1 * (1 - abs(2 * progress - 1))

    # --- full path (CE + feature alignment) ---
    loss_mod = EnhancedUnifiedLoss(init_alpha=0.5, init_beta=0.1)
    total, gl, fl = loss_mod(global_logits, targets, local_loss,
                             personal_features, server_features,
                             round_idx=round_idx, total_rounds=total_rounds)
    total, gl, fl = jax.block_until_ready((total, gl, fl))

    ref_total, ref_gl, ref_fl = _reference(global_logits, targets, local_loss,
                                           personal_features, server_features, alpha, beta)
    np.testing.assert_allclose(np.asarray(total), np.asarray(ref_total), rtol=1e-5, atol=1e-5)
    np.testing.assert_allclose(np.asarray(gl), np.asarray(ref_gl), rtol=1e-5, atol=1e-5)
    np.testing.assert_allclose(np.asarray(fl), np.asarray(ref_fl), rtol=1e-5, atol=1e-5)

    # --- CE-only path (beta == 0): dedicated smaller kernel, no dummy-feature DMA ---
    loss_mod_ce = EnhancedUnifiedLoss(init_alpha=0.5, init_beta=0.0)
    total2, gl2, fl2 = loss_mod_ce(global_logits, targets, local_loss,
                                   personal_features, server_features,
                                   round_idx=round_idx, total_rounds=total_rounds)
    total2, gl2, fl2 = jax.block_until_ready((total2, gl2, fl2))
    np.testing.assert_allclose(np.asarray(gl2), np.asarray(ref_gl), rtol=1e-5, atol=1e-5)
    np.testing.assert_allclose(np.asarray(total2),
                               np.asarray((1 - alpha) * ref_gl + alpha * local_loss),
                               rtol=1e-5, atol=1e-5)
    assert float(fl2) == 0.0

    # --- forced-small-tile test: exercises HW tiling, ragged last tile, the 2-way
    #     "parallel" HW split (nb == 1) and the clamped duplicate tile ---
    feat_shape2 = (B, 4, 24, 24)           # hw = 576: not a multiple of 128
    pf2 = jax.random.normal(k5, feat_shape2, dtype=jnp.float32)
    sf2 = jax.random.normal(k6, feat_shape2, dtype=jnp.float32)
    t3, g3, f3 = _unified_loss_pallas(global_logits, targets, local_loss, pf2, sf2,
                                      alpha, beta, feat_tile_bytes=16 * 1024)
    t3, g3, f3 = jax.block_until_ready((t3, g3, f3))
    r3t, r3g, r3f = _reference(global_logits, targets, local_loss, pf2, sf2, alpha, beta)
    np.testing.assert_allclose(np.asarray(t3), np.asarray(r3t), rtol=1e-5, atol=1e-5)
    np.testing.assert_allclose(np.asarray(g3), np.asarray(r3g), rtol=1e-5, atol=1e-5)
    np.testing.assert_allclose(np.asarray(f3), np.asarray(r3f), rtol=1e-5, atol=1e-5)

    # --- multi-batch-tile test (nb >= 2 preference) ---
    B2 = 16
    gl16 = jax.random.normal(k7, (B2, num_classes), dtype=jnp.float32)
    tg16 = jax.random.randint(k8, (B2,), 0, num_classes, dtype=jnp.int32)
    pf16 = jax.random.normal(k5, (B2, 4, 8, 8), dtype=jnp.float32)
    sf16 = jax.random.normal(k6, (B2, 4, 8, 8), dtype=jnp.float32)
    t4, g4, f4 = _unified_loss_pallas(gl16, tg16, local_loss, pf16, sf16, alpha, beta)
    t4, g4, f4 = jax.block_until_ready((t4, g4, f4))
    r4t, r4g, r4f = _reference(gl16, tg16, local_loss, pf16, sf16, alpha, beta)
    np.testing.assert_allclose(np.asarray(t4), np.asarray(r4t), rtol=1e-5, atol=1e-5)
    np.testing.assert_allclose(np.asarray(g4), np.asarray(r4g), rtol=1e-5, atol=1e-5)
    np.testing.assert_allclose(np.asarray(f4), np.asarray(r4f), rtol=1e-5, atol=1e-5)

    # --- bf16-on-the-wire smoke test (features stay bf16 in HBM, upcast in-kernel) ---
    loss_mod_bf16 = EnhancedUnifiedLoss(init_alpha=0.5, init_beta=0.1)
    total5, _, _ = loss_mod_bf16(global_logits, targets, local_loss,
                                 personal_features.astype(jnp.bfloat16),
                                 server_features.astype(jnp.bfloat16),
                                 round_idx=round_idx, total_rounds=total_rounds)
    total5 = jax.block_until_ready(total5)
    assert np.isfinite(np.asarray(total5, dtype=np.float32))

    print("KERNEL_OK")
</pallas_src>

<mosaic_0001>
module attributes {stable_mosaic.version = 11 : i64} {
  func.func @_unified_partial_kernel(%arg0: i32, %arg1: i32, %arg2: i32, %arg3: memref<8x10xf32, #tpu.memory_space<vmem>>, %arg4: memref<8x1xi32, #tpu.memory_space<vmem>>, %arg5: memref<8x4x256xf32, #tpu.memory_space<vmem>>, %arg6: memref<8x4x256xf32, #tpu.memory_space<vmem>>, %arg7: memref<1x1x1x128xf32, #tpu.memory_space<vmem>>, %arg8: memref<1x1x8x4xf32, #tpu.memory_space<vmem>>, %arg9: memref<1x1x8x4xf32, #tpu.memory_space<vmem>>, %arg10: memref<8x4xf32, #tpu.memory_space<vmem>>, %arg11: memref<8x4xf32, #tpu.memory_space<vmem>>) attributes {dimension_semantics = [#tpu.dimension_semantics<parallel>, #tpu.dimension_semantics<parallel>, #tpu.dimension_semantics<arbitrary>], iteration_bounds = array<i64: 1, 1, 1>, scalar_prefetch = 0 : i64, scratch_operands = 2 : i64, tpu.core_type = #tpu.core_type<tc>, window_params = [{transform_indices = @transform_0, window_bounds = array<i64: 8, 10>}, {transform_indices = @transform_1, window_bounds = array<i64: 8, 1>}, {transform_indices = @transform_2, window_bounds = array<i64: 8, 4, 256>}, {transform_indices = @transform_3, window_bounds = array<i64: 8, 4, 256>}, {transform_indices = @transform_4, window_bounds = array<i64: 1, 1, 1, 128>}, {transform_indices = @transform_5, window_bounds = array<i64: 1, 1, 8, 4>}, {transform_indices = @transform_6, window_bounds = array<i64: 1, 1, 8, 4>}]} {
    %c0_i32 = arith.constant 0 : i32
    %0 = arith.cmpi eq, %arg2, %c0_i32 : i32
    %1 = arith.extui %0 : i1 to i32
    %c0_i32_0 = arith.constant 0 : i32
    %2 = arith.cmpi ne, %1, %c0_i32_0 : i32
    scf.if %2 {
      %cst_17 = arith.constant 0.000000e+00 : f32
      %16 = vector.broadcast %cst_17 : f32 to vector<8x4xf32>
      %c0_18 = arith.constant 0 : index
      %c0_19 = arith.constant 0 : index
      %17 = vector.load %arg10[%c0_18, %c0_19] : memref<8x4xf32, #tpu.memory_space<vmem>>, vector<8x4xf32>
      tpu.vector_store %arg10[%c0_18, %c0_19], %16 {strides = array<i32>} : memref<8x4xf32, #tpu.memory_space<vmem>>, vector<8x4xf32>,
      %cst_20 = arith.constant 0.000000e+00 : f32
      %18 = vector.broadcast %cst_20 : f32 to vector<8x4xf32>
      %c0_21 = arith.constant 0 : index
      %c0_22 = arith.constant 0 : index
      %19 = vector.load %arg11[%c0_21, %c0_22] : memref<8x4xf32, #tpu.memory_space<vmem>>, vector<8x4xf32>
      tpu.vector_store %arg11[%c0_21, %c0_22], %18 {strides = array<i32>} : memref<8x4xf32, #tpu.memory_space<vmem>>, vector<8x4xf32>,
    } else {
    }
    %c0 = arith.constant 0 : index
    %c0_1 = arith.constant 0 : index
    %c0_2 = arith.constant 0 : index
    %3 = vector.load %arg5[%c0, %c0_1, %c0_2] : memref<8x4x256xf32, #tpu.memory_space<vmem>>, vector<8x4x256xf32>
    %c0_3 = arith.constant 0 : index
    %c0_4 = arith.constant 0 : index
    %c0_5 = arith.constant 0 : index
    %4 = vector.load %arg6[%c0_3, %c0_4, %c0_5] : memref<8x4x256xf32, #tpu.memory_space<vmem>>, vector<8x4x256xf32>
    %c0_6 = arith.constant 0 : index
    %c0_7 = arith.constant 0 : index
    %5 = vector.load %arg10[%c0_6, %c0_7] : memref<8x4xf32, #tpu.memory_space<vmem>>, vector<8x4xf32>
    %cst = arith.constant dense<0.000000e+00> : vector<8x4xf32>
    %6 = vector.multi_reduction <add>, %3, %cst [2] : vector<8x4x256xf32> to vector<8x4xf32>
    %7 = arith.addf %5, %6 : vector<8x4xf32>
    %c0_8 = arith.constant 0 : index
    %c0_9 = arith.constant 0 : index
    %8 = vector.load %arg10[%c0_8, %c0_9] : memref<8x4xf32, #tpu.memory_space<vmem>>, vector<8x4xf32>
    tpu.vector_store %arg10[%c0_8, %c0_9], %7 {strides = array<i32>} : memref<8x4xf32, #tpu.memory_space<vmem>>, vector<8x4xf32>,
    %c0_10 = arith.constant 0 : index
    %c0_11 = arith.constant 0 : index
    %9 = vector.load %arg11[%c0_10, %c0_11] : memref<8x4xf32, #tpu.memory_space<vmem>>, vector<8x4xf32>
    %cst_12 = arith.constant dense<0.000000e+00> : vector<8x4xf32>
    %10 = vector.multi_reduction <add>, %4, %cst_12 [2] : vector<8x4x256xf32> to vector<8x4xf32>
    %11 = arith.addf %9, %10 : vector<8x4xf32>
    %c0_13 = arith.constant 0 : index
    %c0_14 = arith.constant 0 : index
    %12 = vector.load %arg11[%c0_13, %c0_14] : memref<8x4xf32, #tpu.memory_space<vmem>>, vector<8x4xf32>
    tpu.vector_store %arg11[%c0_13, %c0_14], %11 {strides = array<i32>} : memref<8x4xf32, #tpu.memory_space<vmem>>, vector<8x4xf32>,
    %c0_i32_15 = arith.constant 0 : i32
    %13 = arith.cmpi eq, %arg2, %c0_i32_15 : i32
    %14 = arith.extui %13 : i1 to i32
    %c0_i32_16 = arith.constant 0 : i32
    %15 = arith.cmpi ne, %14, %c0_i32_16 : i32
    scf.if %15 {
      %c0_17 = arith.constant 0 : index
      %c0_18 = arith.constant 0 : index
      %16 = vector.load %arg10[%c0_17, %c0_18] : memref<8x4xf32, #tpu.memory_space<vmem>>, vector<8x4xf32>
      %17 = vector.shape_cast %16 : vector<8x4xf32> to vector<1x1x8x4xf32>
      %c0_19 = arith.constant 0 : index
      %c0_20 = arith.constant 0 : index
      %c0_21 = arith.constant 0 : index
      %c0_22 = arith.constant 0 : index
      %18 = vector.load %arg8[%c0_19, %c0_20, %c0_21, %c0_22] : memref<1x1x8x4xf32, #tpu.memory_space<vmem>>, vector<1x1x8x4xf32>
      tpu.vector_store %arg8[%c0_19, %c0_20, %c0_21, %c0_22], %17 {strides = array<i32>} : memref<1x1x8x4xf32, #tpu.memory_space<vmem>>, vector<1x1x8x4xf32>,
      %c0_23 = arith.constant 0 : index
      %c0_24 = arith.constant 0 : index
      %19 = vector.load %arg11[%c0_23, %c0_24] : memref<8x4xf32, #tpu.memory_space<vmem>>, vector<8x4xf32>
      %20 = vector.shape_cast %19 : vector<8x4xf32> to vector<1x1x8x4xf32>
      %c0_25 = arith.constant 0 : index
      %c0_26 = arith.constant 0 : index
      %c0_27 = arith.constant 0 : index
      %c0_28 = arith.constant 0 : index
      %21 = vector.load %arg9[%c0_25, %c0_26, %c0_27, %c0_28] : memref<1x1x8x4xf32, #tpu.memory_space<vmem>>, vector<1x1x8x4xf32>
      tpu.vector_store %arg9[%c0_25, %c0_26, %c0_27, %c0_28], %20 {strides = array<i32>} : memref<1x1x8x4xf32, #tpu.memory_space<vmem>>, vector<1x1x8x4xf32>,
      %c0_29 = arith.constant 0 : index
      %c0_30 = arith.constant 0 : index
      %22 = vector.load %arg3[%c0_29, %c0_30] : memref<8x10xf32, #tpu.memory_space<vmem>>, vector<8x10xf32>
      %cst_31 = arith.constant dense<0xFF800000> : vector<8xf32>
      %23 = vector.multi_reduction <maximumf>, %22, %cst_31 [1] : vector<8x10xf32> to vector<8xf32>
      %24 = vector.shape_cast %23 : vector<8xf32> to vector<8x1xf32>
      %25 = vector.broadcast %24 : vector<8x1xf32> to vector<8x10xf32>
      %26 = arith.subf %22, %25 : vector<8x10xf32>
      %27 = math.exp %26 : vector<8x10xf32>
      %cst_32 = arith.constant dense<0.000000e+00> : vector<8xf32>
      %28 = vector.multi_reduction <add>, %27, %cst_32 [1] : vector<8x10xf32> to vector<8xf32>
      %29 = vector.shape_cast %28 : vector<8xf32> to vector<8x1xf32>
      %30 = math.log %29 : vector<8x1xf32>
      %31 = arith.addf %24, %30 : vector<8x1xf32>
      %c0_33 = arith.constant 0 : index
      %c0_34 = arith.constant 0 : index
      %32 = vector.load %arg4[%c0_33, %c0_34] : memref<8x1xi32, #tpu.memory_space<vmem>>, vector<8x1xi32>
      %33 = tpu.iota {dimensions = array<i32: 1>} : vector<8x10xi32>
      %34 = vector.broadcast %32 : vector<8x1xi32> to vector<8x10xi32>
      %35 = arith.cmpi eq, %33, %34 : vector<8x10xi32>
      %cst_35 = arith.constant 0.000000e+00 : f32
      %36 = vector.broadcast %cst_35 : f32 to vector<8x10xf32>
      %37 = arith.select %35, %22, %36 : vector<8x10xi1>, vector<8x10xf32>
      %cst_36 = arith.constant dense<0.000000e+00> : vector<8xf32>
      %38 = vector.multi_reduction <add>, %37, %cst_36 [1] : vector<8x10xf32> to vector<8xf32>
      %39 = vector.shape_cast %38 : vector<8xf32> to vector<8x1xf32>
      %40 = arith.subf %31, %39 : vector<8x1xf32>
      %41 = vector.shape_cast %40 : vector<8x1xf32> to vector<1x8x1xf32>
      %cst_37 = arith.constant dense<0.000000e+00> : vector<1xf32>
      %42 = vector.multi_reduction <add>, %41, %cst_37 [1, 2] : vector<1x8x1xf32> to vector<1xf32>
      %43 = vector.shape_cast %42 : vector<1xf32> to vector<1x1x1xf32>
      %44 = vector.extract %43[0, 0, 0] : f32 from vector<1x1x1xf32>
      %45 = tpu.iota {dimensions = array<i32: 3>} : vector<1x1x1x128xi32>
      %c0_i32_38 = arith.constant 0 : i32
      %46 = vector.broadcast %c0_i32_38 : i32 to vector<1x1x1x128xi32>
      %47 = arith.cmpi eq, %45, %46 : vector<1x1x1x128xi32>
      %cst_39 = arith.constant 0.000000e+00 : f32
      %48 = vector.broadcast %44 : f32 to vector<1x1x1x128xf32>
      %49 = vector.broadcast %cst_39 : f32 to vector<1x1x1x128xf32>
      %50 = arith.select %47, %48, %49 : vector<1x1x1x128xi1>, vector<1x1x1x128xf32>
      %c0_40 = arith.constant 0 : index
      %c0_41 = arith.constant 0 : index
      %c0_42 = arith.constant 0 : index
      %c0_43 = arith.constant 0 : index
      %51 = vector.load %arg7[%c0_40, %c0_41, %c0_42, %c0_43] : memref<1x1x1x128xf32, #tpu.memory_space<vmem>>, vector<1x1x1x128xf32>
      tpu.vector_store %arg7[%c0_40, %c0_41, %c0_42, %c0_43], %50 {strides = array<i32>} : memref<1x1x1x128xf32, #tpu.memory_space<vmem>>, vector<1x1x1x128xf32>,
    } else {
    }
    return
  }
  func.func @transform_0(%arg0: i32, %arg1: i32, %arg2: i32) -> (i32, i32) {
    %c0_i32 = arith.constant 0 : i32
    %c0_i32_0 = arith.constant 0 : i32
    return %arg1, %c0_i32 : i32, i32
  }
  func.func @transform_1(%arg0: i32, %arg1: i32, %arg2: i32) -> (i32, i32) {
    %c0_i32 = arith.constant 0 : i32
    %c0_i32_0 = arith.constant 0 : i32
    return %arg1, %c0_i32 : i32, i32
  }
  func.func @transform_2(%arg0: i32, %arg1: i32, %arg2: i32) -> (i32, i32, i32) {
    %c1_i32 = arith.constant 1 : i32
    %0 = arith.muli %arg0, %c1_i32 : i32
    %1 = arith.addi %0, %arg2 : i32
    %c0_i32 = arith.constant 0 : i32
    %c0_i32_0 = arith.constant 0 : i32
    return %arg1, %c0_i32, %1 : i32, i32, i32
  }
  func.func @transform_3(%arg0: i32, %arg1: i32, %arg2: i32) -> (i32, i32, i32) {
    %c1_i32 = arith.constant 1 : i32
    %0 = arith.muli %arg0, %c1_i32 : i32
    %1 = arith.addi %0, %arg2 : i32
    %c0_i32 = arith.constant 0 : i32
    %c0_i32_0 = arith.constant 0 : i32
    return %arg1, %c0_i32, %1 : i32, i32, i32
  }
  func.func @transform_4(%arg0: i32, %arg1: i32, %arg2: i32) -> (i32, i32, i32, i32) {
    %c0_i32 = arith.constant 0 : i32
    %c0_i32_0 = arith.constant 0 : i32
    %c0_i32_1 = arith.constant 0 : i32
    return %arg0, %arg1, %c0_i32, %c0_i32_0 : i32, i32, i32, i32
  }
  func.func @transform_5(%arg0: i32, %arg1: i32, %arg2: i32) -> (i32, i32, i32, i32) {
    %c0_i32 = arith.constant 0 : i32
    %c0_i32_0 = arith.constant 0 : i32
    %c0_i32_1 = arith.constant 0 : i32
    return %arg0, %arg1, %c0_i32, %c0_i32_0 : i32, i32, i32, i32
  }
  func.func @transform_6(%arg0: i32, %arg1: i32, %arg2: i32) -> (i32, i32, i32, i32) {
    %c0_i32 = arith.constant 0 : i32
    %c0_i32_0 = arith.constant 0 : i32
    %c0_i32_1 = arith.constant 0 : i32
    return %arg0, %arg1, %c0_i32, %c0_i32_0 : i32, i32, i32, i32
  }
}

</mosaic_0001>

<llo_original>
// kernel: tpu_custom_call.1
$region0: #{tpu_custom_call.1}
  #allocation0 [shape = 'u32[]', space=smem, size = 0x4, offset = 0x4, fixed_abs, tag = 'smem constant byte address 0x4 - core index']
  #allocation1 [shape = 'u32[144,128]{1,0:T(1,128)}', space=vmem, size = 0x12000, scoped, tag = 'internal scratch']
  #allocation2 [shape = 'f32[8,4]{1,0:T(8,128)}', space=vmem, size = 0x1000, scoped, tag = 'scratch operand']
  #allocation3 [shape = 'f32[8,4]{1,0:T(8,128)}', space=vmem, size = 0x1000, scoped, tag = 'scratch operand']
  %s0 = inlined_call_operand.vmem [shape: f32[8,10], index: 0, kind: input, shape index: {}]
  %s1 = inlined_call_operand.vmem [shape: s32[8,1], index: 1, kind: input, shape index: {}]
  %s2 = inlined_call_operand.hbm [shape: f32[8,4,256], index: 2, kind: input, shape index: {}]
  %s3 = inlined_call_operand.hbm [shape: f32[8,4,256], index: 3, kind: input, shape index: {}]
  %s4 = inlined_call_operand.hbm [shape: f32[1,1,1,128], index: 4, kind: output, shape index: {0}]
  %s5 = inlined_call_operand.vmem [shape: f32[1,1,8,4], index: 5, kind: output, shape index: {1}]
  %s6 = inlined_call_operand.vmem [shape: f32[1,1,8,4], index: 6, kind: output, shape index: {2}]
  %7 = xla_tuple %s4, %s5, %s6
  %s8 = sld [smem:[#allocation0]]
  $region58: #{tpu_custom_call.1} parent=0
    _
  %s10 = ssub.s32 1, %s8
  %s11 = scalar_select 0, %s10, %s8
  $region1: #{tpu_custom_call.1} parent=0
    #allocation4 [shape = 'u8[32768]{0}', space=vmem, size = 0x8000, scoped, tag = 'input window, operand 2, single buffered']
    #allocation5 [shape = 's32[1]{0}', space=sflag, size = 0x4, scoped, tag = 'scoped memory for tpu_custom_call.1']
    #allocation6 [shape = 's32[1]{0}', space=sflag, size = 0x4, scoped, tag = 'scoped memory for tpu_custom_call.1']
    #allocation7 [shape = 'u8[32768]{0}', space=vmem, size = 0x8000, scoped, tag = 'input window, operand 3, single buffered']
    #allocation8 [shape = 's32[1]{0}', space=sflag, size = 0x4, scoped, tag = 'scoped memory for tpu_custom_call.1']
    #allocation9 [shape = 'u8[512]{0}', space=vmem, size = 0x400, scoped, tag = 'output window, operand 0, single buffered']
    %12 = vsyncpa [#allocation5], 0
    %13 = vsyncpa [#allocation8], 0
    %14 = vsyncpa [#allocation6], 0
    // Predicated region
    $region2: #{tpu_custom_call.1} parent=1 // pred_check
      _
    $region3: #{tpu_custom_call.1} parent=1 // pred_check_branch
      %16 = sbr.rel (0) target = $region5
    $region4: #{tpu_custom_call.1} parent=1 // pred_region
      _
    $region5: #{tpu_custom_call.1} parent=1 // pred_fallthru
      _
    // Predicated region
    $region6: #{tpu_custom_call.1} parent=1 // pred_check
      _
    $region7: #{tpu_custom_call.1} parent=1 // pred_check_branch
      %18 = sbr.rel (0) target = $region9
    $region8: #{tpu_custom_call.1} parent=1 // pred_region
      _
    $region9: #{tpu_custom_call.1} parent=1 // pred_fallthru
      _
    // Predicated region
    $region10: #{tpu_custom_call.1} parent=1 // pred_check
      _
    $region11: #{tpu_custom_call.1} parent=1 // pred_check_branch
      %20 = sbr.rel (0) target = $region13
    $region12: #{tpu_custom_call.1} parent=1 // pred_region
      %s21 = sadd.s32 0, 0
      %s22 = smul.u32 2, %s21
      %s24 = ssub.s32 1024, 1024
      %25 = vsyncadd [#allocation5], %s24
      %s26 = smul.addr %s22, 64
      %s27 = scalar_lea.hbm %s2, %s26
      %s28 = sshll.u32 [#allocation4], 4
      %s29 = int_to_ptr.vmem [resolvable:$true] %s28
      %34 = dma.hbm_to_vmem [thread:$0]  %s27, 1024, %s29, [#allocation5], 128, 128, 8
    $region13: #{tpu_custom_call.1} parent=1 // pred_fallthru
      _
    // Predicated region
    $region14: #{tpu_custom_call.1} parent=1 // pred_check
      _
    $region15: #{tpu_custom_call.1} parent=1 // pred_check_branch
      %36 = sbr.rel (0) target = $region17
    $region16: #{tpu_custom_call.1} parent=1 // pred_region
      %s37 = sadd.s32 0, 0
      %s38 = smul.u32 2, %s37
      %s40 = ssub.s32 1024, 1024
      %41 = vsyncadd [#allocation8], %s40
      %s42 = smul.addr %s38, 64
      %s43 = scalar_lea.hbm %s3, %s42
      %s44 = sshll.u32 [#allocation7], 4
      %s45 = int_to_ptr.vmem [resolvable:$true] %s44
      %50 = dma.hbm_to_vmem [thread:$0]  %s43, 1024, %s45, [#allocation8], 128, 128, 8
    $region17: #{tpu_custom_call.1} parent=1 // pred_fallthru
      _
    // Predicated region
    $region18: #{tpu_custom_call.1} parent=1 // pred_check
      _
    $region19: #{tpu_custom_call.1} parent=1 // pred_check_branch
      %52 = sbr.rel (0) target = $region21
    $region20: #{tpu_custom_call.1} parent=1 // pred_region
      %53 = dma.done [#allocation5], 1024
    $region21: #{tpu_custom_call.1} parent=1 // pred_fallthru
      _
    // Predicated region
    $region22: #{tpu_custom_call.1} parent=1 // pred_check
      _
    $region23: #{tpu_custom_call.1} parent=1 // pred_check_branch
      %55 = sbr.rel (0) target = $region25
    $region24: #{tpu_custom_call.1} parent=1 // pred_region
      %56 = dma.done [#allocation8], 1024
    $region25: #{tpu_custom_call.1} parent=1 // pred_fallthru
      _
    %s57 = sadd.s32 0, 0
    %s58 = smul.u32 2, %s57
    %s59 = sadd.s32 0, 0
    %s60 = smul.u32 2, %s59
    %p61 = scmp.eq.s32.totalorder 0, 0
    // Predicated region
    $region26: #{tpu_custom_call.1} parent=1 // pred_check
      %p62 = pneg %p61
    $region27: #{tpu_custom_call.1} parent=1 // pred_check_branch
      %64 = sbr.rel (%p62) target = $region29
    $region28: #{tpu_custom_call.1} parent=1 // pred_region
      %vm65 = vcmask 31744
      %66 = vst.msk [vmem:[#allocation2] sm:$0xff] %vm65, 0.0
      %67 = vst.msk [vmem:[#allocation3] sm:$0xff] %vm65, 0.0
    $region29: #{tpu_custom_call.1} parent=1 // pred_fallthru
      _
    %v68 = vld [vmem:[#allocation4] sm:$0xff]
    %v69 = vld [vmem:[#allocation4 + $0x8] sm:$0xff]
    %v70 = vld [vmem:[#allocation4 + $0x10] sm:$0xff]
    %v71 = vld [vmem:[#allocation4 + $0x18] sm:$0xff]
    %v72 = vld [vmem:[#allocation4 + $0x20] sm:$0xff]
    %v73 = vld [vmem:[#allocation4 + $0x28] sm:$0xff]
    %v74 = vld [vmem:[#allocation4 + $0x30] sm:$0xff]
    %v75 = vld [vmem:[#allocation4 + $0x38] sm:$0xff]
    %v76 = vld [vmem:[#allocation7] sm:$0xff]
    %v77 = vld [vmem:[#allocation7 + $0x8] sm:$0xff]
    %v78 = vld [vmem:[#allocation7 + $0x10] sm:$0xff]
    %v79 = vld [vmem:[#allocation7 + $0x18] sm:$0xff]
    %v80 = vld [vmem:[#allocation7 + $0x20] sm:$0xff]
    %v81 = vld [vmem:[#allocation7 + $0x28] sm:$0xff]
    %v82 = vld [vmem:[#allocation7 + $0x30] sm:$0xff]
    %v83 = vld [vmem:[#allocation7 + $0x38] sm:$0xff]
    %v84 = vld [vmem:[#allocation2] sm:$0xff]
    %v93 = vcombine.high %v68, %v68
    %v94 = vcombine.high %v69, %v69
    %v95 = vcombine.high %v70, %v70
    %v96 = vcombine.high %v71, %v71
    %v97 = vcombine.high %v72, %v72
    %v98 = vcombine.high %v73, %v73
    %v99 = vcombine.high %v74, %v74
    %v100 = vcombine.high %v75, %v75
    %vm109 = vcmask 1043456
    %v110 = vsel %vm109, %v68, 0.0
    %v111 = vsel %vm109, %v93, 0.0
    %v112 = vadd.f32 %v110, %v111
    %113 = vadd.xlane.f32.xlu0 %v112
    %v114 = vpop.xlane.xlu0 %113
    %v115 = vsel %vm109, %v69, 0.0
    %v116 = vsel %vm109, %v94, 0.0
    %v117 = vadd.f32 %v115, %v116
    %118 = vadd.xlane.f32.xlu0 %v117
    %v119 = vpop.xlane.xlu0 %118
    %v120 = vsel %vm109, %v70, 0.0
    %v121 = vsel %vm109, %v95, 0.0
    %v122 = vadd.f32 %v120, %v121
    %123 = vadd.xlane.f32.xlu0 %v122
    %v124 = vpop.xlane.xlu0 %123
    %v125 = vsel %vm109, %v71, 0.0
    %v126 = vsel %vm109, %v96, 0.0
    %v127 = vadd.f32 %v125, %v126
    %128 = vadd.xlane.f32.xlu0 %v127
    %v129 = vpop.xlane.xlu0 %128
    %v130 = vsel %vm109, %v72, 0.0
    %v131 = vsel %vm109, %v97, 0.0
    %v132 = vadd.f32 %v130, %v131
    %133 = vadd.xlane.f32.xlu0 %v132
    %v134 = vpop.xlane.xlu0 %133
    %v135 = vsel %vm109, %v73, 0.0
    %v136 = vsel %vm109, %v98, 0.0
    %v137 = vadd.f32 %v135, %v136
    %138 = vadd.xlane.f32.xlu0 %v137
    %v139 = vpop.xlane.xlu0 %138
    %v140 = vsel %vm109, %v74, 0.0
    %v141 = vsel %vm109, %v99, 0.0
    %v142 = vadd.f32 %v140, %v141
    %143 = vadd.xlane.f32.xlu0 %v142
    %v144 = vpop.xlane.xlu0 %143
    %v145 = vsel %vm109, %v75, 0.0
    %v146 = vsel %vm109, %v100, 0.0
    %v147 = vadd.f32 %v145, %v146
    %148 = vadd.xlane.f32.xlu0 %v147
    %v149 = vpop.xlane.xlu0 %148
    %v158 = vlaneseq
    %v159 = vand.u32 %v158, 127
    %v160 = vlaneseq
    %v161 = vshrl.u32 %v160, 7
    %v162 = vsub.s32 %v159, %v161
    %v163 = vrot.slane %v114, %v162
    %v164 = vlaneseq
    %v165 = vshrl.u32 %v164, 7
    %v166 = vsub.s32 %v159, %v165
    %v167 = vrot.slane %v119, %v166
    %v168 = vlaneseq
    %v169 = vshrl.u32 %v168, 7
    %v170 = vsub.s32 %v159, %v169
    %v171 = vrot.slane %v124, %v170
    %v172 = vlaneseq
    %v173 = vshrl.u32 %v172, 7
    %v174 = vsub.s32 %v159, %v173
    %v175 = vrot.slane %v129, %v174
    %v176 = vlaneseq
    %v177 = vshrl.u32 %v176, 7
    %v178 = vsub.s32 %v159, %v177
    %v179 = vrot.slane %v134, %v178
    %v180 = vlaneseq
    %v181 = vshrl.u32 %v180, 7
    %v182 = vsub.s32 %v159, %v181
    %v183 = vrot.slane %v139, %v182
    %v184 = vlaneseq
    %v185 = vshrl.u32 %v184, 7
    %v186 = vsub.s32 %v159, %v185
    %v187 = vrot.slane %v144, %v186
    %v188 = vlaneseq
    %v189 = vshrl.u32 %v188, 7
    %v190 = vsub.s32 %v159, %v189
    %v191 = vrot.slane %v149, %v190
    %vm192 = vcmask 1041409
    %v193 = vsel %vm192, %v167, %v163
    %vm194 = vcmask 1042434
    %v195 = vsel %vm194, %v171, %v193
    %vm196 = vcmask 1043459
    %v197 = vsel %vm196, %v175, %v195
    %vm198 = vcmask 1044484
    %v199 = vsel %vm198, %v179, %v197
    %vm200 = vcmask 1045509
    %v201 = vsel %vm200, %v183, %v199
    %vm202 = vcmask 1046534
    %v203 = vsel %vm202, %v187, %v201
    %vm204 = vcmask 1047559
    %v205 = vsel %vm204, %v191, %v203
    %v207 = vadd.f32 %v84, %v205
    %vm208 = vcmask 31744
    %209 = vst.msk [vmem:[#allocation2] sm:$0xff] %vm208, %v207
    %v210 = vld [vmem:[#allocation3] sm:$0xff]
    %v219 = vcombine.high %v76, %v76
    %v220 = vcombine.high %v77, %v77
    %v221 = vcombine.high %v78, %v78
    %v222 = vcombine.high %v79, %v79
    %v223 = vcombine.high %v80, %v80
    %v224 = vcombine.high %v81, %v81
    %v225 = vcombine.high %v82, %v82
    %v226 = vcombine.high %v83, %v83
    %v235 = vsel %vm109, %v76, 0.0
    %v236 = vsel %vm109, %v219, 0.0
    %v237 = vadd.f32 %v235, %v236
    %238 = vadd.xlane.f32.xlu0 %v237
    %v239 = vpop.xlane.xlu0 %238
    %v240 = vsel %vm109, %v77, 0.0
    %v241 = vsel %vm109, %v220, 0.0
    %v242 = vadd.f32 %v240, %v241
    %243 = vadd.xlane.f32.xlu0 %v242
    %v244 = vpop.xlane.xlu0 %243
    %v245 = vsel %vm109, %v78, 0.0
    %v246 = vsel %vm109, %v221, 0.0
    %v247 = vadd.f32 %v245, %v246
    %248 = vadd.xlane.f32.xlu0 %v247
    %v249 = vpop.xlane.xlu0 %248
    %v250 = vsel %vm109, %v79, 0.0
    %v251 = vsel %vm109, %v222, 0.0
    %v252 = vadd.f32 %v250, %v251
    %253 = vadd.xlane.f32.xlu0 %v252
    %v254 = vpop.xlane.xlu0 %253
    %v255 = vsel %vm109, %v80, 0.0
    %v256 = vsel %vm109, %v223, 0.0
    %v257 = vadd.f32 %v255, %v256
    %258 = vadd.xlane.f32.xlu0 %v257
    %v259 = vpop.xlane.xlu0 %258
    %v260 = vsel %vm109, %v81, 0.0
    %v261 = vsel %vm109, %v224, 0.0
    %v262 = vadd.f32 %v260, %v261
    %263 = vadd.xlane.f32.xlu0 %v262
    %v264 = vpop.xlane.xlu0 %263
    %v265 = vsel %vm109, %v82, 0.0
    %v266 = vsel %vm109, %v225, 0.0
    %v267 = vadd.f32 %v265, %v266
    %268 = vadd.xlane.f32.xlu0 %v267
    %v269 = vpop.xlane.xlu0 %268
    %v270 = vsel %vm109, %v83, 0.0
    %v271 = vsel %vm109, %v226, 0.0
    %v272 = vadd.f32 %v270, %v271
    %273 = vadd.xlane.f32.xlu0 %v272
    %v274 = vpop.xlane.xlu0 %273
    %v283 = vlaneseq
    %v284 = vshrl.u32 %v283, 7
    %v285 = vsub.s32 %v159, %v284
    %v286 = vrot.slane %v239, %v285
    %v287 = vlaneseq
    %v288 = vshrl.u32 %v287, 7
    %v289 = vsub.s32 %v159, %v288
    %v290 = vrot.slane %v244, %v289
    %v291 = vlaneseq
    %v292 = vshrl.u32 %v291, 7
    %v293 = vsub.s32 %v159, %v292
    %v294 = vrot.slane %v249, %v293
    %v295 = vlaneseq
    %v296 = vshrl.u32 %v295, 7
    %v297 = vsub.s32 %v159, %v296
    %v298 = vrot.slane %v254, %v297
    %v299 = vlaneseq
    %v300 = vshrl.u32 %v299, 7
    %v301 = vsub.s32 %v159, %v300
    %v302 = vrot.slane %v259, %v301
    %v303 = vlaneseq
    %v304 = vshrl.u32 %v303, 7
    %v305 = vsub.s32 %v159, %v304
    %v306 = vrot.slane %v264, %v305
    %v307 = vlaneseq
    %v308 = vshrl.u32 %v307, 7
    %v309 = vsub.s32 %v159, %v308
    %v310 = vrot.slane %v269, %v309
    %v311 = vlaneseq
    %v312 = vshrl.u32 %v311, 7
    %v313 = vsub.s32 %v159, %v312
    %v314 = vrot.slane %v274, %v313
    %v315 = vsel %vm192, %v290, %v286
    %v316 = vsel %vm194, %v294, %v315
    %v317 = vsel %vm196, %v298, %v316
    %v318 = vsel %vm198, %v302, %v317
    %v319 = vsel %vm200, %v306, %v318
    %v320 = vsel %vm202, %v310, %v319
    %v321 = vsel %vm204, %v314, %v320
    %v323 = vadd.f32 %v210, %v321
    %324 = vst.msk [vmem:[#allocation3] sm:$0xff] %vm208, %v323
    // Predicated region
    $region30: #{tpu_custom_call.1} parent=1 // pred_check
      %p325 = pneg %p61
    $region31: #{tpu_custom_call.1} parent=1 // pred_check_branch
      %327 = sbr.rel (%p325) target = $region33
    $region32: #{tpu_custom_call.1} parent=1 // pred_region
      %v328 = vld [vmem:[#allocation2] sm:$0xff]
      %329 = vst.msk [vmem:[%s5] sm:$0xff] %vm208, %v328
      %v330 = vld [vmem:[#allocation3] sm:$0xff]
      %331 = vst.msk [vmem:[%s6] sm:$0xff] %vm208, %v330
      %v332 = vld [vmem:[%s0] sm:$0xff]
      %vm333 = vcmask 80896
      %v334 = vsel %vm333, %v332, -inf
      %335 = vmax.xlane.f32.xlu0 %v334
      %v336 = vpop.xlane.xlu0 %335
      %v337 = vsub.f32 %v332, %v336
      %v338 = vmul.f32 %v337, 1.442695
      %v339 = vpow.pop %v338
      %v340 = vsel %vm333, %v339, 0.0
      %341 = vadd.xlane.f32.xlu0 %v340
      %v342 = vpop.xlane.xlu0 %341
      %v343 = vlog2.pop %v342
      %v344 = vmul.f32 %v343, 0.6931472
      %v345 = vadd.f32 %v336, %v344
      %v346 = vld [vmem:[%s1] sm:$0xff]
      %347 = vset.pattern.permute.xlu0 0
      %348 = vperm.xlu0 %347, %v346
      %v349 = vpop.permute.xlu0 %348
      %vm350 = vcmp.eq.s32.totalorder %v159, %v349
      %v351 = vsel %vm350, %v332, 0.0
      %v352 = vsel %vm333, %v351, 0.0
      %353 = vadd.xlane.f32.xlu0 %v352
      %v354 = vpop.xlane.xlu0 %353
      %v355 = vsub.f32 %v345, %v354
      %vm356 = vcmask 7168
      %v357 = vsel %vm356, %v355, 0.0
      %358 = vadd.xlane.f32.xlu0 %v357
      %v359 = vpop.xlane.xlu0 %358
      %v360 = vrot.slane %v359, 4
      %v361 = vadd.f32 %v359, %v360
      %v362 = vrot.slane %v361, 2
      %v363 = vadd.f32 %v361, %v362
      %v364 = vrot.slane %v363, 1
      %v365 = vadd.f32 %v363, %v364
      %s366 = vtos %v365
      %vm367 = vcmp.eq.s32.totalorder %v159, 0
      %v368 = vstv %s366
      %v369 = vsel %vm367, %v368, 0.0
      %370 = vst [vmem:[#allocation9] sm:$0x1] %v369
    $region33: #{tpu_custom_call.1} parent=1 // pred_fallthru
      _
    // Predicated region
    $region34: #{tpu_custom_call.1} parent=1 // pred_check
      _
    $region35: #{tpu_custom_call.1} parent=1 // pred_check_branch
      %372 = sbr.rel (0) target = $region37
    $region36: #{tpu_custom_call.1} parent=1 // pred_region
      %s374 = ssub.s32 16, 16
      %375 = vsyncadd [#allocation6], %s374
      %s377 = sshll.u32 [#allocation9], 4
      %s378 = int_to_ptr.vmem [resolvable:$true] %s377
      %380 = dma.vmem_to_hbm [thread:$0]  %s378, 16, %s4, [#allocation6]
    $region37: #{tpu_custom_call.1} parent=1 // pred_fallthru
      _
    // Predicated region
    $region38: #{tpu_custom_call.1} parent=1 // pred_check
      _
    $region39: #{tpu_custom_call.1} parent=1 // pred_check_branch
      %382 = sbr.rel (0) target = $region41
    $region40: #{tpu_custom_call.1} parent=1 // pred_region
      _
    $region41: #{tpu_custom_call.1} parent=1 // pred_fallthru
      _
    // Predicated region
    $region42: #{tpu_custom_call.1} parent=1 // pred_check
      _
    $region43: #{tpu_custom_call.1} parent=1 // pred_check_branch
      %384 = sbr.rel (0) target = $region45
    $region44: #{tpu_custom_call.1} parent=1 // pred_region
      _
    $region45: #{tpu_custom_call.1} parent=1 // pred_fallthru
      _
    // Predicated region
    $region46: #{tpu_custom_call.1} parent=1 // pred_check
      _
    $region47: #{tpu_custom_call.1} parent=1 // pred_check_branch
      %386 = sbr.rel (0) target = $region49
    $region48: #{tpu_custom_call.1} parent=1 // pred_region
      %387 = dma.done [#allocation6], 16
    $region49: #{tpu_custom_call.1} parent=1 // pred_fallthru
      _
    // Predicated region
    $region50: #{tpu_custom_call.1} parent=1 // pred_check
      _
    $region51: #{tpu_custom_call.1} parent=1 // pred_check_branch
      %389 = sbr.rel (0) target = $region53
    $region52: #{tpu_custom_call.1} parent=1 // pred_region
      _
    $region53: #{tpu_custom_call.1} parent=1 // pred_fallthru
      _
    // Predicated region
    $region54: #{tpu_custom_call.1} parent=1 // pred_check
      _
    $region55: #{tpu_custom_call.1} parent=1 // pred_check_branch
      %391 = sbr.rel (0) target = $region57
    $region56: #{tpu_custom_call.1} parent=1 // pred_region
      _
    $region57: #{tpu_custom_call.1} parent=1 // pred_fallthru
      _
    %392 = vsyncpa [#allocation5], 1
    %393 = vsyncpa [#allocation8], 1
    %394 = vsyncpa [#allocation6], 1

</llo_original>
